<compile_context>
chip_gen: v7x
topology: tpu7x:2x2x1
jax: 0.10.0
libtpu: 0.0.40
codegen_flags: <defaults>
</compile_context>

<pallas_src>
import jax
import jax.numpy as jnp
from jax import lax
from jax.experimental import pallas as pl
from jax.experimental.pallas import tpu as pltpu


def _downsample_kernel(x_ref, w_ref, b_ref, o_ref):
    # x_ref: (9C, TM) im2col tile   w_ref: (C, 9C)   b_ref: (C, 1)   o_ref: (C, TM)
    acc = jnp.dot(w_ref[...], x_ref[...], preferred_element_type=jnp.float32)
    o_ref[...] = (acc + b_ref[...]).astype(o_ref.dtype)


def _round_up(x, m):
    return (x + m - 1) // m * m


def _pick_tile_cols(C, n_pix, bpe_in, bpe_out, stream_budget=24 << 20):
    """Lane tile TM: multiple of 128, <= 4096, sized so the double-buffered
    (9C, TM) input + (C, TM) output blocks fit the streaming VMEM budget
    (keeps total VMEM well under v7x's 64 MiB; v5e/v6e have more headroom)."""
    per_col = 2 * (9 * C * bpe_in + C * bpe_out)
    tm = max(128, min(stream_budget // per_col, 4096) // 128 * 128)
    return min(tm, _round_up(n_pix, 128))


def downsample(x_nchw, weight_oihw, bias):
    """Forward pass of Downsample: pad (0,1,0,1) then 3x3 stride-2 valid conv."""
    N, C, H, W = x_nchw.shape
    assert weight_oihw.shape == (C, C, 3, 3)
    # Output spatial dims for the torch pad(0,1,0,1) + k=3, s=2 valid conv
    # (handles odd H/W too: Ho = floor((H+1-3)/2) + 1).
    Ho = (H - 2) // 2 + 1
    Wo = (W - 2) // 2 + 1
    n_pix = Ho * Wo
    out_dtype = x_nchw.dtype
    # Feed the MXU bf16 operands once the conv is big enough to be MXU-bound;
    # casting *before* the im2col also halves its HBM footprint.
    compute_dtype = jnp.bfloat16 if C >= 128 else out_dtype
    bpe_in = jnp.dtype(compute_dtype).itemsize
    bpe_out = jnp.dtype(out_dtype).itemsize

    TM = _pick_tile_cols(C, n_pix, bpe_in, bpe_out)
    P = _round_up(n_pix, TM)          # lane-dense padded pixel count
    T = P // TM

    # ---- exact 9-tap phase im2col (wrapper-side; keeps the kernel slice-free)
    xp = jnp.pad(x_nchw.astype(compute_dtype), ((0, 0), (0, 0), (0, 1), (0, 1)))
    taps = []
    for ki in range(3):
        for kj in range(3):
            taps.append(xp[:, :, ki:ki + 2 * Ho - 1:2, kj:kj + 2 * Wo - 1:2])
    patches = jnp.concatenate(taps, axis=1).reshape(N, 9 * C, n_pix)
    patches = jnp.pad(patches, ((0, 0), (0, 0), (0, P - n_pix)))

    # ---- weights: (C, 9C) with w2[co, (ki*3+kj)*C + ci] = w[co, ci, ki, kj]
    w2 = jnp.transpose(weight_oihw, (2, 3, 1, 0)).reshape(9 * C, C).T
    w2 = w2.astype(compute_dtype)
    b2 = bias.reshape(C, 1).astype(jnp.float32)

    # ---- VMEM budget: double-buffered streaming blocks + weight/bias blocks
    in_block = 9 * C * TM * bpe_in
    out_block = C * TM * bpe_out
    w_bytes = 9 * C * C * bpe_in
    vmem_limit = int(min(
        100 << 20,
        max(16 << 20, 2 * (in_block + out_block + w_bytes) + 8 * C + (2 << 20)),
    ))

    cost = pl.CostEstimate(
        flops=2 * N * P * 9 * C * C,                       # exact executed MXU work
        transcendentals=0,
        bytes_accessed=int(patches.size * bpe_in + w2.size * bpe_in
                           + 4 * C + N * C * P * bpe_out),
    )

    out_flat = pl.pallas_call(
        _downsample_kernel,
        out_shape=jax.ShapeDtypeStruct((N, C, P), out_dtype),
        grid=(N, T),
        in_specs=[
            # Streaming im2col tile: changes every grid step -> double-buffered,
            # cheap to shard across v7x TensorCores on either axis.
            pl.BlockSpec((None, 9 * C, TM), lambda n, t: (n, 0, t)),
            # Weight / bias: constant block index -> fetched once, stays in VMEM.
            pl.BlockSpec((C, 9 * C), lambda n, t: (0, 0)),
            pl.BlockSpec((C, 1), lambda n, t: (0, 0)),
        ],
        out_specs=pl.BlockSpec((None, C, TM), lambda n, t: (n, 0, t)),
        compiler_params=pltpu.CompilerParams(
            dimension_semantics=("parallel", "parallel"),
            vmem_limit_bytes=vmem_limit,
        ),
        cost_estimate=cost,
    )(patches, w2, b2)

    return out_flat[:, :, :n_pix].reshape(N, C, Ho, Wo)


def _reference(x_nchw, weight_oihw, bias):
    """Pure-JAX reference (mirrors torch: pad (0,1,0,1) then stride-2 valid conv)."""
    xp = jnp.pad(x_nchw, ((0, 0), (0, 0), (0, 1), (0, 1)))
    y = lax.conv_general_dilated(
        xp, weight_oihw, window_strides=(2, 2), padding="VALID",
        dimension_numbers=("NCHW", "OIHW", "NCHW"),
    )
    return y + bias.reshape(1, -1, 1, 1)


if __name__ == "__main__":
    key = jax.random.PRNGKey(0)
    ks = jax.random.split(key, 8)

    # --- Test 1: f32 path, module-consistent small shapes --------------------
    N, C, H, W = 2, 4, 16, 16
    x = jax.random.normal(ks[0], (N, C, H, W), dtype=jnp.float32)
    w = jax.random.normal(ks[1], (C, C, 3, 3), dtype=jnp.float32) * 0.1
    b = jax.random.normal(ks[2], (C,), dtype=jnp.float32) * 0.1
    out = jax.block_until_ready(downsample(x, w, b))
    ref = _reference(x, w, b)
    assert out.shape == (N, C, H // 2, W // 2), out.shape
    assert jnp.allclose(out, ref, atol=1e-4, rtol=1e-4), float(
        jnp.max(jnp.abs(out - ref)))

    # --- Test 2: odd spatial dims (torch pad(0,1,0,1)+stride-2 handles these) -
    x_odd = jax.random.normal(ks[3], (1, C, 9, 11), dtype=jnp.float32)
    out_odd = jax.block_until_ready(downsample(x_odd, w, b))
    ref_odd = _reference(x_odd, w, b)
    assert out_odd.shape == ref_odd.shape, (out_odd.shape, ref_odd.shape)
    assert jnp.allclose(out_odd, ref_odd, atol=1e-4, rtol=1e-4), float(
        jnp.max(jnp.abs(out_odd - ref_odd)))

    # --- Test 3: bf16 MXU-operand path (C >= 128), loose tolerance -----------
    C2 = 128
    x2 = jax.random.normal(ks[4], (1, C2, 16, 16), dtype=jnp.float32)
    w_big = jax.random.normal(ks[5], (C2, C2, 3, 3), dtype=jnp.float32) * 0.1
    b_big = jax.random.normal(ks[6], (C2,), dtype=jnp.float32) * 0.1
    out2 = jax.block_until_ready(downsample(x2, w_big, b_big))
    ref2 = _reference(x2, w_big, b_big)
    err = float(jnp.max(jnp.abs(out2 - ref2)))
    assert err < 0.25, err

    print("KERNEL_OK")
</pallas_src>

<mosaic_0001>
module attributes {stable_mosaic.version = 11 : i64} {
  func.func @_downsample_kernel(%arg0: i32, %arg1: i32, %arg2: memref<1x36x128xf32, #tpu.memory_space<vmem>>, %arg3: memref<4x36xf32, #tpu.memory_space<vmem>>, %arg4: memref<4x1xf32, #tpu.memory_space<vmem>>, %arg5: memref<1x4x128xf32, #tpu.memory_space<vmem>>) attributes {dimension_semantics = [#tpu.dimension_semantics<parallel>, #tpu.dimension_semantics<parallel>], iteration_bounds = array<i64: 2, 1>, scalar_prefetch = 0 : i64, scratch_operands = 0 : i64, tpu.core_type = #tpu.core_type<tc>, window_params = [{transform_indices = @transform_0, window_bounds = array<i64: 1, 36, 128>}, {pipeline_mode = #tpu.pipeline_mode<synchronous>, transform_indices = @transform_1, window_bounds = array<i64: 4, 36>}, {pipeline_mode = #tpu.pipeline_mode<synchronous>, transform_indices = @transform_2, window_bounds = array<i64: 4, 1>}, {transform_indices = @transform_3, window_bounds = array<i64: 1, 4, 128>}]} {
    %c0 = arith.constant 0 : index
    %c0_0 = arith.constant 0 : index
    %0 = vector.load %arg3[%c0, %c0_0] : memref<4x36xf32, #tpu.memory_space<vmem>>, vector<4x36xf32>
    %c0_1 = arith.constant 0 : index
    %c0_2 = arith.constant 0 : index
    %c0_3 = arith.constant 0 : index
    %1 = vector.load %arg2[%c0_1, %c0_2, %c0_3] : memref<1x36x128xf32, #tpu.memory_space<vmem>>, vector<1x36x128xf32>
    %2 = vector.shape_cast %1 : vector<1x36x128xf32> to vector<36x128xf32>
    %cst = arith.constant dense<0.000000e+00> : vector<4x128xf32>
    %3 = tpu.matmul %0, %2, %cst {dimension_numbers = #tpu.dot_dimension_numbers<[1], [0], [0], [1], [0, 0, 1, 1], [], []>} : vector<4x36xf32>, vector<36x128xf32>, vector<4x128xf32> -> vector<4x128xf32>
    %c0_4 = arith.constant 0 : index
    %c0_5 = arith.constant 0 : index
    %4 = vector.load %arg4[%c0_4, %c0_5] : memref<4x1xf32, #tpu.memory_space<vmem>>, vector<4x1xf32>
    %5 = vector.broadcast %4 : vector<4x1xf32> to vector<4x128xf32>
    %6 = arith.addf %3, %5 : vector<4x128xf32>
    %c0_6 = arith.constant 0 : index
    %c0_7 = arith.constant 0 : index
    %c0_8 = arith.constant 0 : index
    %7 = vector.load %arg5[%c0_6, %c0_7, %c0_8] : memref<1x4x128xf32, #tpu.memory_space<vmem>>, vector<1x4x128xf32>
    %8 = vector.shape_cast %7 : vector<1x4x128xf32> to vector<4x128xf32>
    %9 = vector.shape_cast %6 : vector<4x128xf32> to vector<1x4x128xf32>
    tpu.vector_store %arg5[%c0_6, %c0_7, %c0_8], %9 {strides = array<i32>} : memref<1x4x128xf32, #tpu.memory_space<vmem>>, vector<1x4x128xf32>,
    return
  }
  func.func @transform_0(%arg0: i32, %arg1: i32) -> (i32, i32, i32) {
    %c0_i32 = arith.constant 0 : i32
    %c0_i32_0 = arith.constant 0 : i32
    return %arg0, %c0_i32, %arg1 : i32, i32, i32
  }
  func.func @transform_1(%arg0: i32, %arg1: i32) -> (i32, i32) {
    %c0_i32 = arith.constant 0 : i32
    %c0_i32_0 = arith.constant 0 : i32
    %c0_i32_1 = arith.constant 0 : i32
    return %c0_i32, %c0_i32_0 : i32, i32
  }
  func.func @transform_2(%arg0: i32, %arg1: i32) -> (i32, i32) {
    %c0_i32 = arith.constant 0 : i32
    %c0_i32_0 = arith.constant 0 : i32
    %c0_i32_1 = arith.constant 0 : i32
    return %c0_i32, %c0_i32_0 : i32, i32
  }
  func.func @transform_3(%arg0: i32, %arg1: i32) -> (i32, i32, i32) {
    %c0_i32 = arith.constant 0 : i32
    %c0_i32_0 = arith.constant 0 : i32
    return %arg0, %c0_i32, %arg1 : i32, i32, i32
  }
}

</mosaic_0001>

<llo_original>
// kernel: tpu_custom_call.1
$region0: #{tpu_custom_call.1}
  #allocation0 [shape = 'u32[]', space=smem, size = 0x4, offset = 0x4, fixed_abs, tag = 'smem constant byte address 0x4 - core index']
  #allocation1 [shape = 'u32[144,128]{1,0:T(1,128)}', space=vmem, size = 0x12000, scoped, tag = 'internal scratch']
  %s0 = inlined_call_operand.vmem [shape: f32[2,36,128], index: 0, kind: input, shape index: {}]
  %s1 = inlined_call_operand.vmem [shape: f32[4,36], index: 1, kind: input, shape index: {}]
  %s2 = inlined_call_operand.vmem [shape: f32[4,1], index: 2, kind: input, shape index: {}]
  %s3 = inlined_call_operand.hbm [shape: f32[2,4,128], index: 3, kind: output, shape index: {}]
  %s4 = sld [smem:[#allocation0]]
  $region45: #{tpu_custom_call.1} parent=0
    _
  %s6 = ssub.s32 1, %s4
  %s7 = scalar_select 0, %s6, %s4
  $region1: #{tpu_custom_call.1} parent=0
    #allocation2 [shape = 'u8[4096]{0}', space=vmem, size = 0x1000, scoped, tag = 'output window, operand 0']
    #allocation3 [shape = 's32[2]{0}', space=sflag, size = 0x8, scoped, tag = 'scoped memory for tpu_custom_call.1']
    %8 = vsyncpa [#allocation3], 0
    %s9 = scalar_lea.sflag [#allocation3], 1
    %10 = vsyncpa %s9, 0
    loop: start=0, step=1, limit=4
    $region2: #{tpu_custom_call.1} parent=1 // loop_pre_header
      _
    $region3: #{tpu_custom_call.1} parent=1 // loop_header
      %s12 = sphi 0, %s16
      %p13 = scmp.ge.s32.totalorder %s12, 4
      %s19 = sphi 0, %s31
      %s20 = sphi 0, %s27
      %s21 = sphi 0, %s19
      %s22 = sphi 0, %s20
      %s23 = sphi 0, %s21
      %s24 = sphi 0, %s22
      %s36 = sphi 0, %s38
      %s39 = sphi 0, %s36
      %s40 = sphi 0, %s39
      %s56 = sphi 0, %s40
      %s60 = sphi 0, %s60
      %s62 = sphi 0, %s60
      %s63 = sphi 0, %s62
      %s77 = sphi 0, %s63
      %s81 = sphi 0, %s81
      %s83 = sphi 0, %s81
      %s84 = sphi 0, %s83
      %s98 = sphi 0, %s84
      %s106 = sphi 0, %s108
      %s109 = sphi 0, %s106
      %s110 = sphi 0, %s109
      %s126 = sphi 0, %s110
    $region4: #{tpu_custom_call.1} parent=1 // loop_header_branch
      %15 = sbr.rel (%p13) target = $region8
    $region5: #{tpu_custom_call.1} parent=1 // loop_body
      %s17 = ssub.s32 %s12, 1
      %s18 = ssub.s32 %s12, 2
      %s25 = sadd.s32 1, %s20
      %p26 = scmp.ge.s32.totalorder %s25, 1
      %s27 = scalar_select %p26, 0, %s25
      %s28 = sadd.s32 1, %s19
      %s29 = scalar_select %p26, %s28, %s19
      %p30 = scmp.ge.s32.totalorder %s29, 2
      %s31 = scalar_select %p30, 0, %s29
      %s32 = ssub.s32 %s19, %s31
      %s33 = ssub.s32 %s20, %s27
      %s34 = sor.u32 %s32, %s33
      %p35 = scmp.eq.s32.totalorder %s34, 0
      %s37 = sadd.s32 %s36, 1
      %s38 = scalar_select %p35, %s36, %s37
      %p41 = pneg %p35
      %p42 = scmp.eq.s32.totalorder %s12, 1
      %p43 = por %p41, %p42
      %p44 = scmp.ne.s32.totalorder %s36, %s39
      %p45 = scmp.eq.s32.totalorder %s12, 0
      %p46 = por %p44, %p45
      %p47 = scmp.ne.s32.totalorder %s36, %s39
      %p48 = scmp.eq.s32.totalorder %s17, 1
      %p49 = por %p47, %p48
      %p50 = scmp.ne.s32.totalorder %s39, %s40
      %p51 = scmp.eq.s32.totalorder %s17, 0
      %p52 = por %p50, %p51
      %p53 = scmp.ne.s32.totalorder %s39, %s40
      %p54 = scmp.eq.s32.totalorder %s18, 1
      %p55 = por %p53, %p54
      %p57 = scmp.ne.s32.totalorder %s40, %s56
      %p58 = scmp.eq.s32.totalorder %s18, 0
      %p59 = por %p57, %p58
      %s61 = sadd.s32 %s60, 1
      %p64 = scmp.eq.s32.totalorder %s12, 1
      %p65 = scmp.ne.s32.totalorder %s60, %s62
      %p66 = scmp.eq.s32.totalorder %s12, 0
      %p67 = por %p65, %p66
      %p68 = scmp.ne.s32.totalorder %s60, %s62
      %p69 = scmp.eq.s32.totalorder %s17, 1
      %p70 = por %p68, %p69
      %p71 = scmp.ne.s32.totalorder %s62, %s63
      %p72 = scmp.eq.s32.totalorder %s17, 0
      %p73 = por %p71, %p72
      %p74 = scmp.ne.s32.totalorder %s62, %s63
      %p75 = scmp.eq.s32.totalorder %s18, 1
      %p76 = por %p74, %p75
      %p78 = scmp.ne.s32.totalorder %s63, %s77
      %p79 = scmp.eq.s32.totalorder %s18, 0
      %p80 = por %p78, %p79
      %s82 = sadd.s32 %s81, 1
      %p85 = scmp.eq.s32.totalorder %s12, 1
      %p86 = scmp.ne.s32.totalorder %s81, %s83
      %p87 = scmp.eq.s32.totalorder %s12, 0
      %p88 = por %p86, %p87
      %p89 = scmp.ne.s32.totalorder %s81, %s83
      %p90 = scmp.eq.s32.totalorder %s17, 1
      %p91 = por %p89, %p90
      %p92 = scmp.ne.s32.totalorder %s83, %s84
      %p93 = scmp.eq.s32.totalorder %s17, 0
      %p94 = por %p92, %p93
      %p95 = scmp.ne.s32.totalorder %s83, %s84
      %p96 = scmp.eq.s32.totalorder %s18, 1
      %p97 = por %p95, %p96
      %p99 = scmp.ne.s32.totalorder %s84, %s98
      %p100 = scmp.eq.s32.totalorder %s18, 0
      %p101 = por %p99, %p100
      %s102 = ssub.s32 %s19, %s31
      %s103 = ssub.s32 %s20, %s27
      %s104 = sor.u32 %s102, %s103
      %p105 = scmp.eq.s32.totalorder %s104, 0
      %s107 = sadd.s32 %s106, 1
      %s108 = scalar_select %p105, %s106, %s107
      %p111 = pneg %p105
      %p112 = scmp.eq.s32.totalorder %s12, 1
      %p113 = por %p111, %p112
      %p114 = scmp.ne.s32.totalorder %s106, %s109
      %p115 = scmp.eq.s32.totalorder %s12, 0
      %p116 = por %p114, %p115
      %p117 = scmp.ne.s32.totalorder %s106, %s109
      %p118 = scmp.eq.s32.totalorder %s17, 1
      %p119 = por %p117, %p118
      %p120 = scmp.ne.s32.totalorder %s109, %s110
      %p121 = scmp.eq.s32.totalorder %s17, 0
      %p122 = por %p120, %p121
      %p123 = scmp.ne.s32.totalorder %s109, %s110
      %p124 = scmp.eq.s32.totalorder %s18, 1
      %p125 = por %p123, %p124
      %p127 = scmp.ne.s32.totalorder %s110, %s126
      %p128 = scmp.eq.s32.totalorder %s18, 0
      %p129 = por %p127, %p128
      %p130 = scmp.le.s32.totalorder 1, %s12
      %p131 = scmp.lt.s32.totalorder %s12, 3
      %p132 = pnand %p130, %p131
      %p133 = pneg %p132
      // Predicated region
      $region9: #{tpu_custom_call.1} parent=5 // pred_check
        _
      $region10: #{tpu_custom_call.1} parent=5 // pred_check_branch
        %135 = sbr.rel (%p132) target = $region12
      $region11: #{tpu_custom_call.1} parent=5 // pred_region
        %s136 = ssub.s32 %s12, 1
        // Predicated region
        $region13: #{tpu_custom_call.1} parent=11 // pred_check
          %p137 = pneg %p73
        $region14: #{tpu_custom_call.1} parent=11 // pred_check_branch
          %139 = sbr.rel (%p137) target = $region16
        $region15: #{tpu_custom_call.1} parent=11 // pred_region
          _
        $region16: #{tpu_custom_call.1} parent=11 // pred_fallthru
          _
        // Predicated region
        $region17: #{tpu_custom_call.1} parent=11 // pred_check
          %p140 = pneg %p94
        $region18: #{tpu_custom_call.1} parent=11 // pred_check_branch
          %142 = sbr.rel (%p140) target = $region20
        $region19: #{tpu_custom_call.1} parent=11 // pred_region
          _
        $region20: #{tpu_custom_call.1} parent=11 // pred_fallthru
          _
      $region12: #{tpu_custom_call.1} parent=5 // pred_fallthru
        _
      %p143 = scmp.lt.s32.totalorder %s12, 2
      // Predicated region
      $region21: #{tpu_custom_call.1} parent=5 // pred_check
        %p144 = pneg %p143
      $region22: #{tpu_custom_call.1} parent=5 // pred_check_branch
        %146 = sbr.rel (%p144) target = $region24
      $region23: #{tpu_custom_call.1} parent=5 // pred_region
        // Predicated region
        $region25: #{tpu_custom_call.1} parent=23 // pred_check
          %p147 = pneg %p46
        $region26: #{tpu_custom_call.1} parent=23 // pred_check_branch
          %149 = sbr.rel (%p147) target = $region28
        $region27: #{tpu_custom_call.1} parent=23 // pred_region
          %p150 = scmp.lt.s32.totalorder %s19, 1
          %s151 = scalar_select %p150, %s19, 1
          %p152 = scmp.lt.s32.totalorder %s20, 0
          %s153 = scalar_select %p152, %s20, 0
          %s154 = smul.addr %s151, 5
          %s155 = sadd.s32 %s153, %s154
          %s156 = smul.addr %s155, 8
          %s157 = scalar_lea.vmem %s0, %s156
        $region28: #{tpu_custom_call.1} parent=23 // pred_fallthru
          _
      $region24: #{tpu_custom_call.1} parent=5 // pred_fallthru
        _
      %p158 = scmp.le.s32.totalorder 1, %s12
      %p159 = scmp.lt.s32.totalorder %s12, 3
      %p160 = pnand %p158, %p159
      %p161 = pneg %p160
      // Predicated region
      $region29: #{tpu_custom_call.1} parent=5 // pred_check
        _
      $region30: #{tpu_custom_call.1} parent=5 // pred_check_branch
        %163 = sbr.rel (%p160) target = $region32
      $region31: #{tpu_custom_call.1} parent=5 // pred_region
        %s164 = ssub.s32 %s12, 1
        %p165 = scmp.lt.s32.totalorder %s21, 1
        %s166 = scalar_select %p165, %s21, 1
        %p167 = scmp.lt.s32.totalorder %s22, 0
        %s168 = scalar_select %p167, %s22, 0
        %s169 = smul.addr %s166, 5
        %s170 = sadd.s32 %s168, %s169
        %s171 = smul.addr %s170, 8
        %s172 = scalar_lea.vmem %s0, %s171
        %p173 = pneg %p52
        %p174 = pneg %p49
        %p175 = pneg %p73
        %p176 = pneg %p70
        %p177 = pneg %p94
        %p178 = pneg %p91
        %p179 = pneg %p122
        %p180 = pneg %p119
        %s181 = sand.u32 %s109, 1
        %s182 = scalar_lea.sflag [#allocation3], %s181
        %s183 = sand.u32 %s109, 1
        %s184 = smul.addr %s183, 4
        %s185 = scalar_lea.vmem [#allocation2], %s184
        %p186 = scmp.lt.s32.totalorder %s21, 1
        %s187 = scalar_select %p186, %s21, 1
        %p188 = scmp.lt.s32.totalorder %s22, 0
        %s189 = scalar_select %p188, %s22, 0
        %s190 = smul.addr %s187, 5
        %s191 = sadd.s32 %s189, %s190
        %s192 = smul.addr %s191, 8
        %s193 = scalar_lea.vmem %s0, %s192
        %v194 = vld [vmem:[%s1] sm:$0xf]
        %v195 = vld [vmem:[%s193] sm:$0xff]
        %v196 = vld [vmem:[%s193 + $0x8] sm:$0xff]
        %v197 = vld [vmem:[%s193 + $0x10] sm:$0xff]
        %v198 = vld [vmem:[%s193 + $0x18] sm:$0xff]
        %v199 = vld [vmem:[%s193 + $0x20] sm:$0xf]
        %v200 = vld [vmem:[%s2] sm:$0xf]
        %202 = vset.pattern.permute.xlu0 0
        %203 = vperm.xlu0 %202, %v200
        %v204 = vpop.permute.xlu0 %203
        %vm206 = vcmask 293888
        %v208 = vsel %vm206, %v194, 0
        %vm210 = vcmask 1043456
        %v212 = vsel %vm210, %v199, 0
        %214 = vmatprep.subr.mxu0 0.0
        %215 = vmatpush1.msra.mxu0 %v195
        %216 = vmatprep.subr.mxu0 0.0
        %217 = vmatpush1.msra.mxu0 %v196
        %218 = vmatprep.subr.mxu0 0.0
        %219 = vmatpush1.msra.mxu0 %v197
        %220 = vmatprep.subr.mxu0 0.0
        %221 = vmatpush1.msra.mxu0 %v198
        %222 = vmatprep.subr.mxu0 0.0
        %223 = vmatpush1.msra.mxu0 %v212
        %224 = vmatprep.subr.mxu0 0.0
        %225 = vmatpush1.msra.mxu0 0.0
        %226 = vmatprep.subr.mxu0 0.0
        %227 = vmatpush1.msra.mxu0 0.0
        %228 = vmatprep.subr.mxu0 0.0
        %229 = vmatpush1.msra.mxu0 0.0
        %230 = vmatprep.subr.mxu0 0.0
        %231 = vmatpush1.msra.mxu0 0.0
        %232 = vmatprep.subr.mxu0 0.0
        %233 = vmatpush1.msra.mxu0 0.0
        %234 = vmatprep.subr.mxu0 0.0
        %235 = vmatpush1.msra.mxu0 0.0
        %236 = vmatprep.subr.mxu0 0.0
        %237 = vmatpush1.msra.mxu0 0.0
        %238 = vmatprep.subr.mxu0 0.0
        %239 = vmatpush1.msra.mxu0 0.0
        %240 = vmatprep.subr.mxu0 0.0
        %241 = vmatpush1.msra.mxu0 0.0
        %242 = vmatprep.subr.mxu0 0.0
        %243 = vmatpush1.msra.mxu0 0.0
        %244 = vmatprep.subr.mxu0 0.0
        %245 = vmatpush1.msra.mxu0 0.0
        %246 = vmatprep.subr.mxu0 0.0
        %247 = vmatpush1.msra.mxu0 0.0
        %248 = vmatprep.subr.mxu0 0.0
        %249 = vmatpush1.msra.mxu0 0.0
        %250 = vmatprep.subr.mxu0 0.0
        %251 = vmatpush1.msra.mxu0 0.0
        %252 = vmatprep.subr.mxu0 0.0
        %253 = vmatpush1.msra.mxu0 0.0
        %254 = vmatprep.subr.mxu0 0.0
        %255 = vmatpush1.msra.mxu0 0.0
        %256 = vmatprep.subr.mxu0 0.0
        %257 = vmatpush1.msra.mxu0 0.0
        %258 = vmatprep.subr.mxu0 0.0
        %259 = vmatpush1.msra.mxu0 0.0
        %260 = vmatprep.subr.mxu0 0.0
        %261 = vmatpush1.msra.mxu0 0.0
        %262 = vmatprep.subr.mxu0 0.0
        %263 = vmatpush1.msra.mxu0 0.0
        %264 = vmatprep.subr.mxu0 0.0
        %265 = vmatpush1.msra.mxu0 0.0
        %266 = vmatprep.subr.mxu0 0.0
        %267 = vmatpush1.msra.mxu0 0.0
        %268 = vmatprep.subr.mxu0 0.0
        %269 = vmatpush1.msra.mxu0 0.0
        %270 = vmatprep.subr.mxu0 0.0
        %271 = vmatpush1.msra.mxu0 0.0
        %272 = vmatprep.subr.mxu0 0.0
        %273 = vmatpush1.msra.mxu0 0.0
        %274 = vmatprep.subr.mxu0 0.0
        %275 = vmatpush1.msra.mxu0 0.0
        %276 = vmatprep.subr.mxu0 0.0
        %277 = vmatpush1.msra.mxu0 0.0
        %278 = vmatprep.mubr.f32.mxu0 0.0
        %279 = vmatmul.mubr.f32.gmra.mrb[0].mxu0 %v208
        %v280 = vpop.f32.mrb[0].mxu0
        %v281 = vadd.f32 %v204, %v280
        %v282 = vpop.f32.mrb[0].mxu0
        %283 = vdwg.mxu0
        %284 = vst [vmem:[%s185] sm:$0xf] %v281
        %s285 = sand.u32 %s109, 1
        %s286 = scalar_lea.sflag [#allocation3], %s285
        %s287 = sand.u32 %s109, 1
        %s288 = smul.addr %s287, 4
        %s289 = scalar_lea.vmem [#allocation2], %s288
        // Predicated region
        $region33: #{tpu_custom_call.1} parent=31 // pred_check
          %p290 = pneg %p119
        $region34: #{tpu_custom_call.1} parent=31 // pred_check_branch
          %292 = sbr.rel (%p290) target = $region36
        $region35: #{tpu_custom_call.1} parent=31 // pred_region
          %s294 = ssub.s32 64, 64
          %295 = vsyncadd %s286, %s294
          %s296 = sadd.s32 %s22, %s21
          %s297 = smul.addr %s296, 64
          %s298 = scalar_lea.hbm %s3, %s297
          %s300 = sshll.u32 %s289, 4
          %s301 = int_to_ptr.vmem [resolvable:$true] %s300
          %303 = dma.vmem_to_hbm [thread:$0]  %s301, 64, %s298, %s286
        $region36: #{tpu_custom_call.1} parent=31 // pred_fallthru
          _
      $region32: #{tpu_custom_call.1} parent=5 // pred_fallthru
        _
      %p304 = scmp.le.s32.totalorder 2, %s12
      // Predicated region
      $region37: #{tpu_custom_call.1} parent=5 // pred_check
        %p305 = pneg %p304
      $region38: #{tpu_custom_call.1} parent=5 // pred_check_branch
        %307 = sbr.rel (%p305) target = $region40
      $region39: #{tpu_custom_call.1} parent=5 // pred_region
        %s308 = ssub.s32 %s12, 2
        // Predicated region
        $region41: #{tpu_custom_call.1} parent=39 // pred_check
          %p309 = pneg %p125
        $region42: #{tpu_custom_call.1} parent=39 // pred_check_branch
          %311 = sbr.rel (%p309) target = $region44
        $region43: #{tpu_custom_call.1} parent=39 // pred_region
          %s312 = sand.u32 %s110, 1
          %s313 = scalar_lea.sflag [#allocation3], %s312
          %s314 = sand.u32 %s110, 1
          %s315 = smul.addr %s314, 4
          %s316 = scalar_lea.vmem [#allocation2], %s315
          %317 = dma.done %s313, 64
        $region44: #{tpu_custom_call.1} parent=39 // pred_fallthru
          _
      $region40: #{tpu_custom_call.1} parent=5 // pred_fallthru
        _
    $region6: #{tpu_custom_call.1} parent=1 // loop_footer
      %s16 = sadd.s32 1, %s12
    $region7: #{tpu_custom_call.1} parent=1 // loop_footer_branch
      %11 = sbr.rel target = $region3
    $region8: #{tpu_custom_call.1} parent=1 // loop_exit
      _
    %318 = vsyncpa [#allocation3], 1
    %s319 = scalar_lea.sflag [#allocation3], 1
    %320 = vsyncpa %s319, 1

</llo_original>
